<compile_context>
chip_gen: v7x
topology: tpu7x:2x2x1
jax: 0.10.0
libtpu: 0.0.40
codegen_flags: <defaults>
</compile_context>

<pallas_src>
import jax
import jax.numpy as jnp
from jax.experimental import pallas as pl
from jax.experimental.pallas import tpu as pltpu

EPS = 1e-5  # PyTorch BatchNorm1d default eps
_VMEM_LIMIT = 64 * 1024 * 1024


def _round_up(n, m):
    return ((n + m - 1) // m) * m


def _largest_divisor(n, cap):
    for d in range(min(n, cap), 0, -1):
        if n % d == 0:
            return d
    return 1


# ---------------------------------------------------------------------------
# Embedding: Conv1d(k=3, pad=1) + folded eval-mode BatchNorm1d + ReLU
# ---------------------------------------------------------------------------

def _im2col_k3(x):
    """x: (B, T, C) -> (B, T, 3C)  (Conv1d kernel_size=3, padding=1)."""
    B, T, C = x.shape
    xp = jnp.pad(x, ((0, 0), (1, 1), (0, 0)))
    return jnp.concatenate([xp[:, 0:T], xp[:, 1:T + 1], xp[:, 2:T + 2]], axis=-1)


def _fold_conv_bn(w, b, gamma, beta, mean, var, *, cin_pad, cout_pad):
    """Fold eval-mode BN into the conv; return an im2col weight matrix + bias.

    w: (Cout, Cin, K) (torch layout), b/gamma/beta/mean/var: (Cout,)
    Returns wmat: (K*cin_pad, cout_pad), bias: (1, cout_pad); padded rows/cols are 0.
    """
    scale = gamma * jax.lax.rsqrt(var + EPS)                  # (Cout,)
    w_f = w * scale[:, None, None]
    b_f = (b - mean) * scale + beta
    cout, cin, K = w.shape
    w_f = jnp.pad(w_f, ((0, cout_pad - cout), (0, cin_pad - cin), (0, 0)))
    wmat = jnp.transpose(w_f, (2, 1, 0)).reshape(K * cin_pad, cout_pad)
    bias = jnp.pad(b_f, (0, cout_pad - cout)).reshape(1, cout_pad)
    return wmat, bias


def _conv_bn_relu_kernel(x_ref, w_ref, b_ref, o_ref):
    # bf16 MXU operands, f32 accumulation; bias add + ReLU in f32; bf16 store.
    acc = jnp.dot(x_ref[...], w_ref[...], preferred_element_type=jnp.float32)
    acc = acc + b_ref[...]
    o_ref[...] = jnp.maximum(acc, 0.0).astype(o_ref.dtype)


def _conv_bn_relu(x, wmat, bias, *, tile_rows):
    """x: (B, T, C) bf16, wmat: (3C, Cout_pad) bf16, bias: (1, Cout_pad) f32."""
    B, T, C = x.shape
    cout_pad = wmat.shape[1]
    u = _im2col_k3(x).reshape(B * T, 3 * C)
    fpad = _round_up(3 * C, 128)                 # lane-dense input blocks
    if fpad != 3 * C:
        u = jnp.pad(u, ((0, 0), (0, fpad - 3 * C)))
        wmat = jnp.pad(wmat, ((0, fpad - 3 * C), (0, 0)))
    rows = B * T
    tr = min(tile_rows, _round_up(rows, 8))
    pad = (-rows) % tr
    if pad:
        u = jnp.pad(u, ((0, pad), (0, 0)))
    grid = (u.shape[0] // tr,)

    out = pl.pallas_call(
        _conv_bn_relu_kernel,
        out_shape=jax.ShapeDtypeStruct((u.shape[0], cout_pad), jnp.bfloat16),
        grid_spec=pltpu.PrefetchScalarGridSpec(
            num_scalar_prefetch=0,
            grid=grid,
            in_specs=[pl.BlockSpec((tr, fpad), lambda i: (i, 0)),
                      pl.BlockSpec(wmat.shape, lambda i: (0, 0)),
                      pl.BlockSpec(bias.shape, lambda i: (0, 0))],
            out_specs=pl.BlockSpec((tr, cout_pad), lambda i: (i, 0)),
        ),
        compiler_params=pltpu.CompilerParams(
            dimension_semantics=("parallel",),
            vmem_limit_bytes=_VMEM_LIMIT),
    )(u, wmat, bias)
    return out[:rows].reshape(B, T, cout_pad)


# ---------------------------------------------------------------------------
# BiLSTM stage
#   1) hoisted gate projection:  gates_x = sum_k x_k @ W_k + bias   (all t at once)
#   2) fused fwd+bwd recurrent kernel over time chunks (h/c in VMEM scratch)
# ---------------------------------------------------------------------------

def _make_gates_kernel(n):
    def kernel(*refs):
        x_refs = refs[:n]
        w_refs = refs[n:2 * n]
        b_ref = refs[2 * n]
        o_ref = refs[2 * n + 1]
        acc = jnp.dot(x_refs[0][...], w_refs[0][...],
                      preferred_element_type=jnp.float32)
        for k in range(1, n):
            acc = acc + jnp.dot(x_refs[k][...], w_refs[k][...],
                                preferred_element_type=jnp.float32)
        o_ref[...] = acc + b_ref[...]
    return kernel


def _gates_proj(x_list, w_list, bias, *, tile_rows):
    """x_list[k]: (rows, d_k) bf16, w_list[k]: (d_k, G) bf16, bias: (1, G) f32.

    Returns gates (rows, G) f32 = sum_k x_k @ W_k + bias  (row-tiled Pallas matmul).
    """
    rows = x_list[0].shape[0]
    G = w_list[0].shape[1]
    tr = min(tile_rows, _round_up(rows, 8))
    pad = (-rows) % tr
    if pad:
        x_list = [jnp.pad(x, ((0, pad), (0, 0))) for x in x_list]
    rows_pad = rows + pad
    n = len(x_list)

    in_specs = ([pl.BlockSpec((tr, x.shape[1]), lambda i: (i, 0)) for x in x_list]
                + [pl.BlockSpec(w.shape, lambda i: (0, 0)) for w in w_list]
                + [pl.BlockSpec(bias.shape, lambda i: (0, 0))])

    out = pl.pallas_call(
        _make_gates_kernel(n),
        out_shape=jax.ShapeDtypeStruct((rows_pad, G), jnp.float32),
        grid_spec=pltpu.PrefetchScalarGridSpec(
            num_scalar_prefetch=0,
            grid=(rows_pad // tr,),
            in_specs=in_specs,
            out_specs=pl.BlockSpec((tr, G), lambda i: (i, 0)),
        ),
        compiler_params=pltpu.CompilerParams(
            dimension_semantics=("parallel",),
            vmem_limit_bytes=_VMEM_LIMIT),
    )(*x_list, *w_list, bias)
    return out[:rows]


def _bilstm_recurrent(gates, whh_f, whh_b, *, tb_max=64):
    """Fused bidirectional recurrence.

    gates: (T, Bp, 8H) f32  (cols [0:4H] fwd pre-activations, [4H:8H] bwd)
    whh_f / whh_b: (H, 4H) bf16
    Returns out_f, out_b: (T, Bp, H) f32 (bwd already time-aligned, not reversed).
    """
    T, Bp, G = gates.shape
    H = whh_f.shape[0]
    tb = _largest_divisor(T, tb_max)     # time-chunk size (must divide T)
    nc = T // tb
    unroll = tb <= 32

    def kernel(gxf_ref, gxb_ref, wf_ref, wb_ref, of_ref, ob_ref, hf, cf, hb, cb):
        @pl.when(pl.program_id(0) == 0)
        def _():
            hf[...] = jnp.zeros_like(hf)
            cf[...] = jnp.zeros_like(cf)
            hb[...] = jnp.zeros_like(hb)
            cb[...] = jnp.zeros_like(cb)

        def cell(gx, h, c, whh_ref):
            # gx already holds x@Wih + b; only the small recurrent matmul is here.
            g = gx + jnp.dot(h.astype(jnp.bfloat16), whh_ref[...],
                             preferred_element_type=jnp.float32)
            i = jax.nn.sigmoid(g[:, 0 * H:1 * H])
            f = jax.nn.sigmoid(g[:, 1 * H:2 * H])
            gg = jnp.tanh(g[:, 2 * H:3 * H])
            o = jax.nn.sigmoid(g[:, 3 * H:4 * H])
            c_new = f * c + i * gg
            h_new = o * jnp.tanh(c_new)
            return h_new, c_new

        def step(t, carry):
            # forward direction: local time t of chunk i
            h_new, c_new = cell(gxf_ref[t], hf[...], cf[...], wf_ref)
            hf[...] = h_new
            cf[...] = c_new
            of_ref[t] = h_new
            # backward direction: mirrored chunk (nc-1-i), walked high -> low
            tr = tb - 1 - t
            h2, c2 = cell(gxb_ref[tr], hb[...], cb[...], wb_ref)
            hb[...] = h2
            cb[...] = c2
            ob_ref[tr] = h2
            return carry

        jax.lax.fori_loop(0, tb, step, 0, unroll=unroll)

    out_f, out_b = pl.pallas_call(
        kernel,
        out_shape=(jax.ShapeDtypeStruct((T, Bp, H), jnp.float32),
                   jax.ShapeDtypeStruct((T, Bp, H), jnp.float32)),
        grid_spec=pltpu.PrefetchScalarGridSpec(
            num_scalar_prefetch=0,
            grid=(nc,),
            in_specs=[
                pl.BlockSpec((tb, Bp, 4 * H), lambda i: (i, 0, 0)),           # fwd gates
                pl.BlockSpec((tb, Bp, 4 * H), lambda i: (nc - 1 - i, 0, 1)),  # bwd gates
                pl.BlockSpec(whh_f.shape, lambda i: (0, 0)),
                pl.BlockSpec(whh_b.shape, lambda i: (0, 0)),
            ],
            out_specs=[
                pl.BlockSpec((tb, Bp, H), lambda i: (i, 0, 0)),               # fwd out
                pl.BlockSpec((tb, Bp, H), lambda i: (nc - 1 - i, 0, 0)),      # bwd out
            ],
            scratch_shapes=[pltpu.VMEM((Bp, H), jnp.float32),   # h fwd
                            pltpu.VMEM((Bp, H), jnp.float32),   # c fwd
                            pltpu.VMEM((Bp, H), jnp.float32),   # h bwd
                            pltpu.VMEM((Bp, H), jnp.float32)],  # c bwd
        ),
        compiler_params=pltpu.CompilerParams(
            dimension_semantics=("arbitrary",)),   # time recurrence is sequential
    )(gates, gates, whh_f, whh_b)
    return out_f, out_b


def _prep_layer_weights(layer, splits, split_pads):
    """Stack per-direction Wih into (din, 8H), split by input segment, pad rows."""
    (wih_f, whh_f, b_f), (wih_b, whh_b, b_b) = layer
    w_big = jnp.concatenate([wih_f, wih_b], axis=1)          # (din, 8H)
    bias = jnp.concatenate([b_f, b_b], axis=1)               # (1, 8H) f32
    w_list = []
    off = 0
    for real, padded in zip(splits, split_pads):
        wk = w_big[off:off + real]
        if padded > real:
            wk = jnp.pad(wk, ((0, padded - real), (0, 0)))
        w_list.append(wk.astype(jnp.bfloat16))
        off += real
    return w_list, bias, whh_f.astype(jnp.bfloat16), whh_b.astype(jnp.bfloat16)


def _bilstm_layer(x_list, layer, splits, split_pads, *, tile_rows, tb_max):
    """x_list[k]: (T, Bp, d_k). Returns (out_f, out_b), each (T, Bp, H) f32."""
    T, Bp = x_list[0].shape[0], x_list[0].shape[1]
    w_list, bias, whh_f, whh_b = _prep_layer_weights(layer, splits, split_pads)
    x_flat = [x.reshape(T * Bp, x.shape[-1]).astype(jnp.bfloat16) for x in x_list]
    gates = _gates_proj(x_flat, w_list, bias, tile_rows=tile_rows)
    gates = gates.reshape(T, Bp, -1)
    return _bilstm_recurrent(gates, whh_f, whh_b, tb_max=tb_max)


# ---------------------------------------------------------------------------
# Encoder forward (Pallas) and pure-JAX reference
# ---------------------------------------------------------------------------

def _trunc_reshape(x, lens):
    B, T, F = x.shape
    if T % 2 != 0:
        x = x[:, :-1, :]
        T -= 1
        lens = jnp.where(lens % 2 != 0, lens - 1, lens)
    return x.reshape(B, T // 2, 2 * F), lens // 2


def encoder_forward(x, x_lens, params, *, tile_rows=1024, tb_max=64):
    """x: (B, T, input_size) f32. Returns ((B, T//4, 2H) f32, encoder_lens)."""
    conv_params, blstm_params, pblstm_params = params
    H = conv_params[0][0].shape[0]
    cpad = _round_up(H, 128)                       # lane-dense channel width
    B, T, _ = x.shape
    Bp = _round_up(B, 8)                           # sublane-dense batch for LSTM stage

    # --- embedding: 3 x (Conv1d + folded BN + ReLU), bf16 matmul operands ---
    h = x.astype(jnp.bfloat16)
    for (w, b, gamma, beta, mean, var) in conv_params:
        wmat, bias = _fold_conv_bn(w, b, gamma, beta, mean, var,
                                   cin_pad=h.shape[-1], cout_pad=cpad)
        h = _conv_bn_relu(h, wmat.astype(jnp.bfloat16), bias, tile_rows=tile_rows)
    # h: (B, T, cpad) bf16; channels >= H are exactly zero. Keep padded (no slice).

    # --- to time-major, pad batch to a multiple of 8 ---
    h_tm = jnp.transpose(h, (1, 0, 2))             # (T, B, cpad)
    if Bp != B:
        h_tm = jnp.pad(h_tm, ((0, 0), (0, Bp - B), (0, 0)))

    # --- 4-layer bidirectional LSTM stack (fused fwd+bwd per layer) ---
    of, ob = _bilstm_layer([h_tm], blstm_params[0], splits=[H], split_pads=[cpad],
                           tile_rows=tile_rows, tb_max=tb_max)
    for layer in blstm_params[1:]:
        of, ob = _bilstm_layer([of, ob], layer, splits=[H, H], split_pads=[H, H],
                               tile_rows=tile_rows, tb_max=tb_max)

    # --- 2 x pBLSTM: halve time, double features (even||odd), BiLSTM ---
    lens = x_lens
    Tcur = T
    for layer in pblstm_params:
        if Tcur % 2 != 0:
            of = of[:Tcur - 1]
            ob = ob[:Tcur - 1]
            Tcur -= 1
            lens = jnp.where(lens % 2 != 0, lens - 1, lens)
        fe = of.reshape(Tcur // 2, 2, Bp, H)
        be = ob.reshape(Tcur // 2, 2, Bp, H)
        # pBLSTM input feature order is [fwd_even, bwd_even, fwd_odd, bwd_odd]
        x_list = [fe[:, 0], be[:, 0], fe[:, 1], be[:, 1]]
        Tcur = Tcur // 2
        lens = lens // 2
        of, ob = _bilstm_layer(x_list, layer, splits=[H, H, H, H],
                               split_pads=[H, H, H, H],
                               tile_rows=tile_rows, tb_max=tb_max)

    out = jnp.concatenate([of, ob], axis=-1)       # (T//4, Bp, 2H), fwd||bwd like torch
    out = jnp.transpose(out, (1, 0, 2))[:B]        # (B, T//4, 2H)
    return out, lens


def _lstm_direction_ref(x_tm, wih, whh, b, *, reverse):
    T, B, Din = x_tm.shape
    H = whh.shape[0]
    xs = x_tm[::-1] if reverse else x_tm

    def step(carry, x_t):
        h, c = carry
        gates = x_t @ wih + h @ whh + b
        i = jax.nn.sigmoid(gates[:, 0 * H:1 * H])
        f = jax.nn.sigmoid(gates[:, 1 * H:2 * H])
        g = jnp.tanh(gates[:, 2 * H:3 * H])
        o = jax.nn.sigmoid(gates[:, 3 * H:4 * H])
        c = f * c + i * g
        h = o * jnp.tanh(c)
        return (h, c), h

    init = (jnp.zeros((B, H), jnp.float32), jnp.zeros((B, H), jnp.float32))
    _, hs = jax.lax.scan(step, init, xs)
    return hs[::-1] if reverse else hs


def _bilstm_ref(x_tm, layer_params):
    (wih_f, whh_f, b_f), (wih_b, whh_b, b_b) = layer_params
    hf = _lstm_direction_ref(x_tm, wih_f, whh_f, b_f, reverse=False)
    hb = _lstm_direction_ref(x_tm, wih_b, whh_b, b_b, reverse=True)
    return jnp.concatenate([hf, hb], axis=-1)


def encoder_reference(x, x_lens, params):
    """Pure-JAX f32 reference of the eval-mode Encoder forward."""
    conv_params, blstm_params, pblstm_params = params
    h = x
    for (w, b, gamma, beta, mean, var) in conv_params:
        cout, cin, K = w.shape
        wmat = jnp.transpose(w, (2, 1, 0)).reshape(K * cin, cout)
        z = _im2col_k3(h) @ wmat + b
        z = (z - mean) * jax.lax.rsqrt(var + EPS) * gamma + beta
        h = jnp.maximum(z, 0.0)
    h_tm = jnp.transpose(h, (1, 0, 2))
    for layer in blstm_params:
        h_tm = _bilstm_ref(h_tm, layer)
    h = jnp.transpose(h_tm, (1, 0, 2))
    lens = x_lens
    for layer in pblstm_params:
        h, lens = _trunc_reshape(h, lens)
        h_tm = jnp.transpose(h, (1, 0, 2))
        h_tm = _bilstm_ref(h_tm, layer)
        h = jnp.transpose(h_tm, (1, 0, 2))
    return h, lens


# ---------------------------------------------------------------------------
# Synthetic parameters (PyTorch layouts; LSTM weights pre-transposed to (in, 4H))
# ---------------------------------------------------------------------------

def make_params(key, input_size, hidden_size):
    H = hidden_size
    it = iter(jax.random.split(key, 60))

    def nrm(shape, scale):
        return scale * jax.random.normal(next(it), shape, jnp.float32)

    conv_params = []
    cin = input_size
    for _ in range(3):
        w = nrm((H, cin, 3), 1.0 / float(3 * cin) ** 0.5)   # (Cout, Cin, K)
        b = nrm((H,), 0.05)
        gamma = 1.0 + nrm((H,), 0.1)
        beta = nrm((H,), 0.1)
        mean = nrm((H,), 0.05)
        var = jnp.abs(1.0 + nrm((H,), 0.1))
        conv_params.append((w, b, gamma, beta, mean, var))
        cin = H

    def lstm_dir_params(din, h):
        wih = nrm((din, 4 * h), 1.0 / float(din) ** 0.5)    # = torch weight_ih.T
        whh = nrm((h, 4 * h), 1.0 / float(h) ** 0.5)        # = torch weight_hh.T
        bias = nrm((1, 4 * h), 0.05)                        # = b_ih + b_hh
        return (wih, whh, bias)

    blstm_params = []
    din = H
    for _ in range(4):
        blstm_params.append((lstm_dir_params(din, H), lstm_dir_params(din, H)))
        din = 2 * H

    pblstm_params = [(lstm_dir_params(4 * H, H), lstm_dir_params(4 * H, H))
                     for _ in range(2)]
    return (conv_params, blstm_params, pblstm_params)


if __name__ == "__main__":
    input_size = 28        # raw acoustic feature dim
    hidden_size = 32       # encoder_hidden_size (small demo)
    B, T = 2, 16           # T divisible by 4 -> both pBLSTM halvings are exact

    key = jax.random.PRNGKey(0)
    kx, kp = jax.random.split(key)
    x = jax.random.normal(kx, (B, T, input_size), jnp.float32)
    x_lens = jnp.full((B,), T, dtype=jnp.int32)
    params = make_params(kp, input_size, hidden_size)

    out, out_lens = encoder_forward(x, x_lens, params)
    out = jax.block_until_ready(out)

    ref, ref_lens = encoder_reference(x, x_lens, params)
    assert out.shape == (B, T // 4, 2 * hidden_size), out.shape
    assert jnp.array_equal(out_lens, ref_lens), (out_lens, ref_lens)
    err = float(jnp.max(jnp.abs(out - ref)))
    # Tolerance reflects bf16 MXU operands in BOTH the conv stack and the LSTM
    # input/recurrent projections (per perf feedback); reference is f32 end-to-end.
    assert err < 2e-1, err

    print("KERNEL_OK")
</pallas_src>

<mosaic_0001>
module attributes {stable_mosaic.version = 11 : i64} {
  func.func @_conv_bn_relu_kernel(%arg0: i32, %arg1: memref<32x128xbf16, #tpu.memory_space<vmem>>, %arg2: memref<128x128xbf16, #tpu.memory_space<vmem>>, %arg3: memref<1x128xf32, #tpu.memory_space<vmem>>, %arg4: memref<32x128xbf16, #tpu.memory_space<vmem>>) attributes {dimension_semantics = [#tpu.dimension_semantics<parallel>], iteration_bounds = array<i64: 1>, scalar_prefetch = 0 : i64, scratch_operands = 0 : i64, tpu.core_type = #tpu.core_type<tc>, window_params = [{transform_indices = @transform_0, window_bounds = array<i64: 32, 128>}, {pipeline_mode = #tpu.pipeline_mode<synchronous>, transform_indices = @transform_1, window_bounds = array<i64: 128, 128>}, {pipeline_mode = #tpu.pipeline_mode<synchronous>, transform_indices = @transform_2, window_bounds = array<i64: 1, 128>}, {transform_indices = @transform_3, window_bounds = array<i64: 32, 128>}]} {
    %c0 = arith.constant 0 : index
    %c0_0 = arith.constant 0 : index
    %0 = vector.load %arg1[%c0, %c0_0] : memref<32x128xbf16, #tpu.memory_space<vmem>>, vector<32x128xbf16>
    %c0_1 = arith.constant 0 : index
    %c0_2 = arith.constant 0 : index
    %1 = vector.load %arg2[%c0_1, %c0_2] : memref<128x128xbf16, #tpu.memory_space<vmem>>, vector<128x128xbf16>
    %cst = arith.constant dense<0.000000e+00> : vector<32x128xf32>
    %2 = tpu.matmul %0, %1, %cst {dimension_numbers = #tpu.dot_dimension_numbers<[1], [0], [0], [1], [0, 0, 1, 1], [], []>} : vector<32x128xbf16>, vector<128x128xbf16>, vector<32x128xf32> -> vector<32x128xf32>
    %c0_3 = arith.constant 0 : index
    %c0_4 = arith.constant 0 : index
    %3 = vector.load %arg3[%c0_3, %c0_4] : memref<1x128xf32, #tpu.memory_space<vmem>>, vector<1x128xf32>
    %4 = vector.broadcast %3 : vector<1x128xf32> to vector<32x128xf32>
    %5 = arith.addf %2, %4 : vector<32x128xf32>
    %cst_5 = arith.constant 0.000000e+00 : f32
    %6 = vector.broadcast %cst_5 : f32 to vector<32x128xf32>
    %7 = arith.maximumf %5, %6 : vector<32x128xf32>
    %8 = arith.truncf %7 : vector<32x128xf32> to vector<32x128xbf16>
    %c0_6 = arith.constant 0 : index
    %c0_7 = arith.constant 0 : index
    %9 = vector.load %arg4[%c0_6, %c0_7] : memref<32x128xbf16, #tpu.memory_space<vmem>>, vector<32x128xbf16>
    tpu.vector_store %arg4[%c0_6, %c0_7], %8 {strides = array<i32>} : memref<32x128xbf16, #tpu.memory_space<vmem>>, vector<32x128xbf16>,
    return
  }
  func.func @transform_0(%arg0: i32) -> (i32, i32) {
    %c0_i32 = arith.constant 0 : i32
    %c0_i32_0 = arith.constant 0 : i32
    return %arg0, %c0_i32 : i32, i32
  }
  func.func @transform_1(%arg0: i32) -> (i32, i32) {
    %c0_i32 = arith.constant 0 : i32
    %c0_i32_0 = arith.constant 0 : i32
    %c0_i32_1 = arith.constant 0 : i32
    return %c0_i32, %c0_i32_0 : i32, i32
  }
  func.func @transform_2(%arg0: i32) -> (i32, i32) {
    %c0_i32 = arith.constant 0 : i32
    %c0_i32_0 = arith.constant 0 : i32
    %c0_i32_1 = arith.constant 0 : i32
    return %c0_i32, %c0_i32_0 : i32, i32
  }
  func.func @transform_3(%arg0: i32) -> (i32, i32) {
    %c0_i32 = arith.constant 0 : i32
    %c0_i32_0 = arith.constant 0 : i32
    return %arg0, %c0_i32 : i32, i32
  }
}

</mosaic_0001>

<llo_original>
// kernel: tpu_custom_call.1
$region0: #{tpu_custom_call.1}
  #allocation0 [shape = 'u32[]', space=smem, size = 0x4, offset = 0x4, fixed_abs, tag = 'smem constant byte address 0x4 - core index']
  #allocation1 [shape = 'u32[144,128]{1,0:T(1,128)}', space=vmem, size = 0x12000, scoped, tag = 'internal scratch']
  %s0 = inlined_call_operand.hbm [shape: bf16[32,128], index: 0, kind: input, shape index: {}]
  %s1 = inlined_call_operand.hbm [shape: bf16[128,128], index: 1, kind: input, shape index: {}]
  %s2 = inlined_call_operand.hbm [shape: f32[1,128], index: 2, kind: input, shape index: {}]
  %s3 = inlined_call_operand.hbm [shape: bf16[32,128], index: 3, kind: output, shape index: {}]
  %s4 = sld [smem:[#allocation0]]
  $region34: #{tpu_custom_call.1} parent=0
    _
  %s6 = ssub.s32 1, %s4
  %s7 = scalar_select 0, %s6, %s4
  $region1: #{tpu_custom_call.1} parent=0
    #allocation2 [shape = 'u8[8192]{0}', space=vmem, size = 0x2000, scoped, tag = 'input window, operand 0, single buffered']
    #allocation3 [shape = 's32[1]{0}', space=sflag, size = 0x4, scoped, tag = 'scoped memory for tpu_custom_call.1']
    #allocation4 [shape = 's32[1]{0}', space=sflag, size = 0x4, scoped, tag = 'scoped memory for tpu_custom_call.1']
    #allocation5 [shape = 'u8[32768]{0}', space=vmem, size = 0x8000, scoped, tag = 'input window, operand 1, single buffered']
    #allocation6 [shape = 's32[1]{0}', space=sflag, size = 0x4, scoped, tag = 'scoped memory for tpu_custom_call.1']
    #allocation7 [shape = 'u8[512]{0}', space=vmem, size = 0x400, scoped, tag = 'input window, operand 2, single buffered']
    #allocation8 [shape = 'u8[8192]{0}', space=vmem, size = 0x2000, scoped, tag = 'output window, operand 0, single buffered']
    %8 = vsyncpa [#allocation3], 0
    %9 = vsyncpa [#allocation6], 0
    %10 = vsyncpa [#allocation4], 0
    // Predicated region
    $region2: #{tpu_custom_call.1} parent=1 // pred_check
      _
    $region3: #{tpu_custom_call.1} parent=1 // pred_check_branch
      %12 = sbr.rel (0) target = $region5
    $region4: #{tpu_custom_call.1} parent=1 // pred_region
      %s14 = ssub.s32 256, 256
      %15 = vsyncadd [#allocation3], %s14
      %s16 = sshll.u32 [#allocation2], 4
      %s17 = int_to_ptr.vmem [resolvable:$true] %s16
      %22 = dma.hbm_to_vmem [thread:$0]  %s0, 256, %s17, [#allocation3], 64, 64, 4
    $region5: #{tpu_custom_call.1} parent=1 // pred_fallthru
      _
    // Predicated region
    $region6: #{tpu_custom_call.1} parent=1 // pred_check
      _
    $region7: #{tpu_custom_call.1} parent=1 // pred_check_branch
      %24 = sbr.rel (0) target = $region9
    $region8: #{tpu_custom_call.1} parent=1 // pred_region
      %s26 = ssub.s32 1024, 1024
      %27 = vsyncadd [#allocation6], %s26
      %s28 = sshll.u32 [#allocation5], 4
      %s29 = int_to_ptr.vmem [resolvable:$true] %s28
      %34 = dma.hbm_to_vmem [thread:$0]  %s1, 1024, %s29, [#allocation6], 64, 64, 4
    $region9: #{tpu_custom_call.1} parent=1 // pred_fallthru
      _
    // Predicated region
    $region10: #{tpu_custom_call.1} parent=1 // pred_check
      _
    $region11: #{tpu_custom_call.1} parent=1 // pred_check_branch
      %36 = sbr.rel (0) target = $region13
    $region12: #{tpu_custom_call.1} parent=1 // pred_region
      %s38 = ssub.s32 16, 16
      %39 = vsyncadd [#allocation6], %s38
      %s41 = sshll.u32 [#allocation7], 4
      %s42 = int_to_ptr.vmem [resolvable:$true] %s41
      %44 = dma.hbm_to_vmem [thread:$0]  %s2, 16, %s42, [#allocation6]
    $region13: #{tpu_custom_call.1} parent=1 // pred_fallthru
      _
    // Predicated region
    $region14: #{tpu_custom_call.1} parent=1 // pred_check
      _
    $region15: #{tpu_custom_call.1} parent=1 // pred_check_branch
      %46 = sbr.rel (0) target = $region17
    $region16: #{tpu_custom_call.1} parent=1 // pred_region
      %47 = dma.done [#allocation3], 256
    $region17: #{tpu_custom_call.1} parent=1 // pred_fallthru
      _
    // Predicated region
    $region18: #{tpu_custom_call.1} parent=1 // pred_check
      _
    $region19: #{tpu_custom_call.1} parent=1 // pred_check_branch
      %49 = sbr.rel (0) target = $region21
    $region20: #{tpu_custom_call.1} parent=1 // pred_region
      %50 = dma.done [#allocation6], 1024
    $region21: #{tpu_custom_call.1} parent=1 // pred_fallthru
      _
    // Predicated region
    $region22: #{tpu_custom_call.1} parent=1 // pred_check
      _
    $region23: #{tpu_custom_call.1} parent=1 // pred_check_branch
      %52 = sbr.rel (0) target = $region25
    $region24: #{tpu_custom_call.1} parent=1 // pred_region
      %53 = dma.done [#allocation6], 16
    $region25: #{tpu_custom_call.1} parent=1 // pred_fallthru
      _
    %v55 = vld [vmem:[#allocation2] sm:$0xf]
    %v56 = vld [vmem:[#allocation2 + $0x4] sm:$0xf]
    %v57 = vld [vmem:[#allocation2 + $0x8] sm:$0xf]
    %v58 = vld [vmem:[#allocation2 + $0xc] sm:$0xf]
    %v59 = vld [vmem:[#allocation5] sm:$0xf]
    %v60 = vld [vmem:[#allocation5 + $0x4] sm:$0xf]
    %v61 = vld [vmem:[#allocation5 + $0x8] sm:$0xf]
    %v62 = vld [vmem:[#allocation5 + $0xc] sm:$0xf]
    %v63 = vld [vmem:[#allocation5 + $0x10] sm:$0xf]
    %v64 = vld [vmem:[#allocation5 + $0x14] sm:$0xf]
    %v65 = vld [vmem:[#allocation5 + $0x18] sm:$0xf]
    %v66 = vld [vmem:[#allocation5 + $0x1c] sm:$0xf]
    %v67 = vld [vmem:[#allocation5 + $0x20] sm:$0xf]
    %v68 = vld [vmem:[#allocation5 + $0x24] sm:$0xf]
    %v69 = vld [vmem:[#allocation5 + $0x28] sm:$0xf]
    %v70 = vld [vmem:[#allocation5 + $0x2c] sm:$0xf]
    %v71 = vld [vmem:[#allocation5 + $0x30] sm:$0xf]
    %v72 = vld [vmem:[#allocation5 + $0x34] sm:$0xf]
    %v73 = vld [vmem:[#allocation5 + $0x38] sm:$0xf]
    %v74 = vld [vmem:[#allocation5 + $0x3c] sm:$0xf]
    %v75 = vld [vmem:[#allocation7] sm:$0x1]
    %v77 = vlaneseq
    %v78 = vshrl.u32 %v77, 7
    %v79 = vsub.s32 0, %v78
    %v80 = vrot.slane %v75, %v79
    %v86 = vunpack.c.l.b16 %v55
    %v87 = vunpack.c.l.b16 %v56
    %v88 = vunpack.c.l.b16 %v57
    %v89 = vunpack.c.l.b16 %v58
    %v90 = vpack.c.b16 %v87, %v86
    %v91 = vpack.c.b16 %v89, %v88
    %v110 = vunpack.c.l.b16 %v59
    %v111 = vunpack.c.l.b16 %v60
    %v112 = vunpack.c.l.b16 %v61
    %v113 = vunpack.c.l.b16 %v62
    %v114 = vunpack.c.l.b16 %v63
    %v115 = vunpack.c.l.b16 %v64
    %v116 = vunpack.c.l.b16 %v65
    %v117 = vunpack.c.l.b16 %v66
    %v118 = vunpack.c.l.b16 %v67
    %v119 = vunpack.c.l.b16 %v68
    %v120 = vunpack.c.l.b16 %v69
    %v121 = vunpack.c.l.b16 %v70
    %v122 = vunpack.c.l.b16 %v71
    %v123 = vunpack.c.l.b16 %v72
    %v124 = vunpack.c.l.b16 %v73
    %v125 = vunpack.c.l.b16 %v74
    %v126 = vpack.c.b16 %v111, %v110
    %v127 = vpack.c.b16 %v113, %v112
    %v128 = vpack.c.b16 %v115, %v114
    %v129 = vpack.c.b16 %v117, %v116
    %v130 = vpack.c.b16 %v119, %v118
    %v131 = vpack.c.b16 %v121, %v120
    %v132 = vpack.c.b16 %v123, %v122
    %v133 = vpack.c.b16 %v125, %v124
    %142 = vmatprep.subr.bf16.mxu0 0
    %143 = vmatpush1.bf16.msra.mxu0 %v126
    %144 = vmatprep.subr.bf16.mxu0 0
    %145 = vmatpush1.bf16.msra.mxu0 %v127
    %146 = vmatprep.subr.bf16.mxu0 0
    %147 = vmatpush1.bf16.msra.mxu0 %v128
    %148 = vmatprep.subr.bf16.mxu0 0
    %149 = vmatpush1.bf16.msra.mxu0 %v129
    %150 = vmatprep.subr.bf16.mxu0 0
    %151 = vmatpush1.bf16.msra.mxu0 %v130
    %152 = vmatprep.subr.bf16.mxu0 0
    %153 = vmatpush1.bf16.msra.mxu0 %v131
    %154 = vmatprep.subr.bf16.mxu0 0
    %155 = vmatpush1.bf16.msra.mxu0 %v132
    %156 = vmatprep.subr.bf16.mxu0 0
    %157 = vmatpush1.bf16.msra.mxu0 %v133
    %158 = vmatprep.subr.bf16.mxu0 0
    %159 = vmatpush1.bf16.msra.mxu0 0
    %160 = vmatprep.subr.bf16.mxu0 0
    %161 = vmatpush1.bf16.msra.mxu0 0
    %162 = vmatprep.subr.bf16.mxu0 0
    %163 = vmatpush1.bf16.msra.mxu0 0
    %164 = vmatprep.subr.bf16.mxu0 0
    %165 = vmatpush1.bf16.msra.mxu0 0
    %166 = vmatprep.subr.bf16.mxu0 0
    %167 = vmatpush1.bf16.msra.mxu0 0
    %168 = vmatprep.subr.bf16.mxu0 0
    %169 = vmatpush1.bf16.msra.mxu0 0
    %170 = vmatprep.subr.bf16.mxu0 0
    %171 = vmatpush1.bf16.msra.mxu0 0
    %172 = vmatprep.subr.bf16.mxu0 0
    %173 = vmatpush1.bf16.msra.mxu0 0
    %174 = vmatprep.mubr.bf16.mxu0 0
    %175 = vmatmul.mubr.bf16.gmra.mrb[0].mxu0 %v90
    %v176 = vpop.f32.mrb[0].mxu0
    %v177 = vadd.f32 %v80, %v176
    %v178 = vpop.f32.mrb[0].mxu0
    %v179 = vpop.f32.mrb[0].mxu0
    %v180 = vadd.f32 %v80, %v179
    %v181 = vpop.f32.mrb[0].mxu0
    %182 = vmatprep.mubr.bf16.mxu0 0
    %183 = vmatmul.mubr.bf16.gmra.mrb[0].mxu0 %v91
    %v184 = vpop.f32.mrb[0].mxu0
    %v185 = vadd.f32 %v80, %v184
    %v186 = vpop.f32.mrb[0].mxu0
    %v187 = vpop.f32.mrb[0].mxu0
    %v188 = vadd.f32 %v80, %v187
    %v189 = vpop.f32.mrb[0].mxu0
    %190 = vdwg.mxu0
    %v191 = vmax.f32 %v177, 0.0
    %v192 = vmax.f32 %v180, 0.0
    %v193 = vmax.f32 %v185, 0.0
    %v194 = vmax.f32 %v188, 0.0
    %v195 = vpack.c.bf16 %v192, %v191
    %v196 = vpack.c.bf16 %v194, %v193
    %v199 = vunpack.c.l.b16 %v195
    %v200 = vunpack.c.h.b16 %v195
    %v201 = vunpack.c.l.b16 %v196
    %v202 = vunpack.c.h.b16 %v196
    %v203 = vpack.c.b16 %v199, %v199
    %v204 = vpack.c.b16 %v200, %v200
    %v205 = vpack.c.b16 %v201, %v201
    %v206 = vpack.c.b16 %v202, %v202
    %211 = vst [vmem:[#allocation8] sm:$0xf] %v203
    %212 = vst [vmem:[#allocation8 + $0x4] sm:$0xf] %v204
    %213 = vst [vmem:[#allocation8 + $0x8] sm:$0xf] %v205
    %214 = vst [vmem:[#allocation8 + $0xc] sm:$0xf] %v206
    // Predicated region
    $region26: #{tpu_custom_call.1} parent=1 // pred_check
      _
    $region27: #{tpu_custom_call.1} parent=1 // pred_check_branch
      %216 = sbr.rel (0) target = $region29
    $region28: #{tpu_custom_call.1} parent=1 // pred_region
      %s218 = ssub.s32 256, 256
      %219 = vsyncadd [#allocation4], %s218
      %s220 = sshll.u32 [#allocation8], 4
      %s221 = int_to_ptr.vmem [resolvable:$true] %s220
      %226 = dma.vmem_to_hbm [thread:$0]  %s221, 256, %s3, [#allocation4], 64, 64, 4
    $region29: #{tpu_custom_call.1} parent=1 // pred_fallthru
      _
    // Predicated region
    $region30: #{tpu_custom_call.1} parent=1 // pred_check
      _
    $region31: #{tpu_custom_call.1} parent=1 // pred_check_branch
      %228 = sbr.rel (0) target = $region33
    $region32: #{tpu_custom_call.1} parent=1 // pred_region
      %229 = dma.done [#allocation4], 256
    $region33: #{tpu_custom_call.1} parent=1 // pred_fallthru
      _
    %230 = vsyncpa [#allocation3], 1
    %231 = vsyncpa [#allocation6], 1
    %232 = vsyncpa [#allocation4], 1

</llo_original>
